<compile_context>
chip_gen: v6e
topology: v6e:2x2x1
jax: 0.10.0
libtpu: 0.0.40
codegen_flags: <defaults>
</compile_context>

<pallas_src>
import jax
import jax.numpy as jnp
from jax.experimental import pallas as pl
from jax.experimental.pallas import tpu as pltpu

KERNEL = 3
STRIDE = 3
_LANE = 128


def _round_up(x, m):
    return ((x + m - 1) // m) * m


def _ceil_out_dim(d, k, s):
    # PyTorch ceil_mode rule: ceil((d - k)/s) + 1, but the last window must
    # start strictly inside the input.
    o = -(-(d - k) // s) + 1
    if (o - 1) * s >= d:
        o -= 1
    return o


def _chip_budgets():
    """Generation-aware (input-tile budget, scoped-VMEM limit, megacore split)."""
    try:
        vmem_cap = pltpu.get_tpu_info().vmem_capacity_bytes
    except Exception:
        vmem_cap = 64 << 20  # conservative fallback (v7x-like sizing works everywhere)
    if vmem_cap <= (64 << 20):
        # v7x: 64 MiB VMEM / TC, 2 TCs -> small tiles, split lanes across cores.
        return 4 << 20, 32 << 20, True
    # v5e / v6e: single TC, 128 MiB VMEM -> fewer, bigger grid steps.
    return 16 << 20, 64 << 20, False


def _maxpool_kernel(x_ref, o_ref):
    # x_ref: (k*k, TS, TB)  — tap-major, merged spatial on sublanes, channels on lanes.
    # o_ref: (TS, TB)
    acc = x_ref[0]
    for t in range(1, x_ref.shape[0]):
        acc = jnp.maximum(acc, x_ref[t])
    o_ref[...] = acc


def maxpool2d_ceil(x, k=KERNEL, s=STRIDE):
    """torch.nn.MaxPool2d(kernel_size=k, stride=s, ceil_mode=True) for NCHW."""
    # TODO(synk): only non-overlapping pooling (stride == kernel_size) is
    # implemented; the Tudui module uses k == s == 3.
    assert s == k, "Pallas maxpool kernel assumes stride == kernel_size"
    N, C, H, W = x.shape
    NC = N * C
    OH = _ceil_out_dim(H, k, s)
    OW = _ceil_out_dim(W, k, s)
    HP, WP = OH * k, OW * k
    itemsize = x.dtype.itemsize
    kk = k * k

    tile_budget, vmem_limit, prefer_multicore = _chip_budgets()

    # ---- tile sizing (dtype-aware) ------------------------------------------
    sub = max(8, 32 // itemsize)          # sublane packing: 8 f32 / 16 bf16 / 32 int8
    ohw = OH * OW
    ohw_full = _round_up(ohw, sub)
    nc128 = _round_up(NC, _LANE)

    slab_bytes = kk * ohw_full * _LANE * itemsize   # one 128-lane input slab
    if slab_bytes <= tile_budget:
        # Full spatial extent per block; widen the lane tile to fill the budget.
        ts = ohw_full
        tb = min(nc128, max(_LANE, (tile_budget // slab_bytes) * _LANE))
        if prefer_multicore and nc128 >= 2 * _LANE:
            # v7x: guarantee a >=2-step (near-even) lane grid so both TCs engage.
            tb = min(tb, _round_up(nc128 // 2, _LANE))
    else:
        # Large images: also block the merged spatial axis so the tile stays
        # within the scoped-VMEM budget once double-buffered.
        ts = max(sub, (tile_budget // (kk * _LANE * itemsize)) // sub * sub)
        tb = _LANE

    OHWP = _round_up(ohw, ts)
    NCP = _round_up(NC, tb)
    grid = (NCP // tb, OHWP // ts)

    # ---- host-side layout plumbing (one fused XLA pad/reshape/transpose) ----
    # Edge padding is exact for max (every ragged ceil_mode window contains the
    # boundary row/col it replicates) and works for any dtype.
    # TODO(synk): this channels-last transpose roughly doubles end-to-end HBM
    # traffic; keep activations in (H, W, N*C) layout upstream to elide it.
    xf = x.reshape(NC, H, W)
    xf = jnp.pad(xf, ((0, NCP - NC), (0, HP - H), (0, WP - W)), mode="edge")
    x3 = (xf.reshape(NCP, OH, k, OW, k)
            .transpose(2, 4, 1, 3, 0)              # (k, k, OH, OW, NCP)
            .reshape(kk, ohw, NCP))
    if OHWP > ohw:
        x3 = jnp.pad(x3, ((0, 0), (0, OHWP - ohw), (0, 0)), mode="edge")

    out = pl.pallas_call(
        _maxpool_kernel,
        out_shape=jax.ShapeDtypeStruct((OHWP, NCP), x.dtype),
        grid=grid,
        in_specs=[pl.BlockSpec((kk, ts, tb), lambda b, sp: (0, sp, b))],
        out_specs=pl.BlockSpec((ts, tb), lambda b, sp: (sp, b)),
        compiler_params=pltpu.CompilerParams(
            dimension_semantics=("parallel", "parallel"),
            vmem_limit_bytes=vmem_limit,
        ),
    )(x3)

    # (OHWP, NCP) -> (N, C, OH, OW), dropping spatial/lane padding.
    return out[:ohw, :NC].reshape(OH, OW, N, C).transpose(2, 3, 0, 1)


def _reference_maxpool(x, k=KERNEL, s=STRIDE):
    # Pure-JAX reference with the same ceil_mode window sizing.
    N, C, H, W = x.shape
    OH = _ceil_out_dim(H, k, s)
    OW = _ceil_out_dim(W, k, s)
    HP = (OH - 1) * s + k
    WP = (OW - 1) * s + k
    return jax.lax.reduce_window(
        x, -jnp.inf, jax.lax.max,
        window_dimensions=(1, 1, k, k),
        window_strides=(1, 1, s, s),
        padding=((0, 0), (0, 0), (0, HP - H), (0, WP - W)),
    )


class Tudui:
    """JAX/Pallas port of the PyTorch Tudui module (MaxPool2d only, no params)."""

    def __call__(self, x):
        return maxpool2d_ceil(x)


if __name__ == "__main__":
    key = jax.random.PRNGKey(0)
    x = jax.random.normal(key, (2, 4, 16, 16), dtype=jnp.float32)  # NCHW

    model = Tudui()
    y = jax.block_until_ready(model(x))

    y_ref = _reference_maxpool(x)
    assert y.shape == (2, 4, 6, 6), y.shape
    assert jnp.allclose(y, y_ref), "Pallas maxpool mismatch vs reference"

    print("KERNEL_OK")
</pallas_src>

<mosaic_0001>
module attributes {stable_mosaic.version = 11 : i64} {
  func.func @_maxpool_kernel(%arg0: i32, %arg1: i32, %arg2: memref<9x40x128xf32, #tpu.memory_space<vmem>>, %arg3: memref<40x128xf32, #tpu.memory_space<vmem>>) attributes {dimension_semantics = [#tpu.dimension_semantics<parallel>, #tpu.dimension_semantics<parallel>], iteration_bounds = array<i64: 1, 1>, scalar_prefetch = 0 : i64, scratch_operands = 0 : i64, tpu.core_type = #tpu.core_type<tc>, window_params = [{transform_indices = @transform_0, window_bounds = array<i64: 9, 40, 128>}, {transform_indices = @transform_1, window_bounds = array<i64: 40, 128>}]} {
    %c0 = arith.constant 0 : index
    %c0_0 = arith.constant 0 : index
    %c0_1 = arith.constant 0 : index
    %0 = vector.load %arg2[%c0, %c0_0, %c0_1] : memref<9x40x128xf32, #tpu.memory_space<vmem>>, vector<1x40x128xf32>
    %1 = vector.shape_cast %0 : vector<1x40x128xf32> to vector<40x128xf32>
    %c1 = arith.constant 1 : index
    %c0_2 = arith.constant 0 : index
    %c0_3 = arith.constant 0 : index
    %2 = vector.load %arg2[%c1, %c0_2, %c0_3] : memref<9x40x128xf32, #tpu.memory_space<vmem>>, vector<1x40x128xf32>
    %3 = vector.shape_cast %2 : vector<1x40x128xf32> to vector<40x128xf32>
    %4 = arith.maximumf %1, %3 : vector<40x128xf32>
    %c2 = arith.constant 2 : index
    %c0_4 = arith.constant 0 : index
    %c0_5 = arith.constant 0 : index
    %5 = vector.load %arg2[%c2, %c0_4, %c0_5] : memref<9x40x128xf32, #tpu.memory_space<vmem>>, vector<1x40x128xf32>
    %6 = vector.shape_cast %5 : vector<1x40x128xf32> to vector<40x128xf32>
    %7 = arith.maximumf %4, %6 : vector<40x128xf32>
    %c3 = arith.constant 3 : index
    %c0_6 = arith.constant 0 : index
    %c0_7 = arith.constant 0 : index
    %8 = vector.load %arg2[%c3, %c0_6, %c0_7] : memref<9x40x128xf32, #tpu.memory_space<vmem>>, vector<1x40x128xf32>
    %9 = vector.shape_cast %8 : vector<1x40x128xf32> to vector<40x128xf32>
    %10 = arith.maximumf %7, %9 : vector<40x128xf32>
    %c4 = arith.constant 4 : index
    %c0_8 = arith.constant 0 : index
    %c0_9 = arith.constant 0 : index
    %11 = vector.load %arg2[%c4, %c0_8, %c0_9] : memref<9x40x128xf32, #tpu.memory_space<vmem>>, vector<1x40x128xf32>
    %12 = vector.shape_cast %11 : vector<1x40x128xf32> to vector<40x128xf32>
    %13 = arith.maximumf %10, %12 : vector<40x128xf32>
    %c5 = arith.constant 5 : index
    %c0_10 = arith.constant 0 : index
    %c0_11 = arith.constant 0 : index
    %14 = vector.load %arg2[%c5, %c0_10, %c0_11] : memref<9x40x128xf32, #tpu.memory_space<vmem>>, vector<1x40x128xf32>
    %15 = vector.shape_cast %14 : vector<1x40x128xf32> to vector<40x128xf32>
    %16 = arith.maximumf %13, %15 : vector<40x128xf32>
    %c6 = arith.constant 6 : index
    %c0_12 = arith.constant 0 : index
    %c0_13 = arith.constant 0 : index
    %17 = vector.load %arg2[%c6, %c0_12, %c0_13] : memref<9x40x128xf32, #tpu.memory_space<vmem>>, vector<1x40x128xf32>
    %18 = vector.shape_cast %17 : vector<1x40x128xf32> to vector<40x128xf32>
    %19 = arith.maximumf %16, %18 : vector<40x128xf32>
    %c7 = arith.constant 7 : index
    %c0_14 = arith.constant 0 : index
    %c0_15 = arith.constant 0 : index
    %20 = vector.load %arg2[%c7, %c0_14, %c0_15] : memref<9x40x128xf32, #tpu.memory_space<vmem>>, vector<1x40x128xf32>
    %21 = vector.shape_cast %20 : vector<1x40x128xf32> to vector<40x128xf32>
    %22 = arith.maximumf %19, %21 : vector<40x128xf32>
    %c8 = arith.constant 8 : index
    %c0_16 = arith.constant 0 : index
    %c0_17 = arith.constant 0 : index
    %23 = vector.load %arg2[%c8, %c0_16, %c0_17] : memref<9x40x128xf32, #tpu.memory_space<vmem>>, vector<1x40x128xf32>
    %24 = vector.shape_cast %23 : vector<1x40x128xf32> to vector<40x128xf32>
    %25 = arith.maximumf %22, %24 : vector<40x128xf32>
    %c0_18 = arith.constant 0 : index
    %c0_19 = arith.constant 0 : index
    %26 = vector.load %arg3[%c0_18, %c0_19] : memref<40x128xf32, #tpu.memory_space<vmem>>, vector<40x128xf32>
    tpu.vector_store %arg3[%c0_18, %c0_19], %25 {strides = array<i32>} : memref<40x128xf32, #tpu.memory_space<vmem>>, vector<40x128xf32>,
    return
  }
  func.func @transform_0(%arg0: i32, %arg1: i32) -> (i32, i32, i32) {
    %c0_i32 = arith.constant 0 : i32
    %c0_i32_0 = arith.constant 0 : i32
    return %c0_i32, %arg1, %arg0 : i32, i32, i32
  }
  func.func @transform_1(%arg0: i32, %arg1: i32) -> (i32, i32) {
    %c0_i32 = arith.constant 0 : i32
    return %arg1, %arg0 : i32, i32
  }
}

</mosaic_0001>

<llo_original>
// kernel: tpu_custom_call.1
$region0: #{tpu_custom_call.1}
  #allocation0 [shape = 'u32[]', space=smem, size = 0x4, offset = 0x4, fixed_abs, tag = 'smem constant byte address 0x4 - core index']
  #allocation1 [shape = 'u32[144,128]{1,0:T(1,128)}', space=vmem, size = 0x12000, scoped, tag = 'internal scratch']
  %s0 = inlined_call_operand.hbm [shape: f32[9,40,128], index: 0, kind: input, shape index: {}]
  %s1 = inlined_call_operand.hbm [shape: f32[40,128], index: 1, kind: output, shape index: {}]
  %s2 = sld [smem:[#allocation0]]
  $region18: #{tpu_custom_call.1} parent=0
    _
  %s4 = ssub.s32 1, %s2
  %s5 = scalar_select 0, %s4, %s2
  $region1: #{tpu_custom_call.1} parent=0
    #allocation2 [shape = 'u8[184320]{0}', space=vmem, size = 0x2d000, scoped, tag = 'input window, operand 0, single buffered']
    #allocation3 [shape = 's32[1]{0}', space=sflag, size = 0x4, scoped, tag = 'scoped memory for tpu_custom_call.1']
    #allocation4 [shape = 's32[1]{0}', space=sflag, size = 0x4, scoped, tag = 'scoped memory for tpu_custom_call.1']
    #allocation5 [shape = 'u8[20480]{0}', space=vmem, size = 0x5000, scoped, tag = 'output window, operand 0, single buffered']
    %6 = vsyncpa [#allocation3], 0
    %7 = vsyncpa [#allocation4], 0
    // Predicated region
    $region2: #{tpu_custom_call.1} parent=1 // pred_check
      _
    $region3: #{tpu_custom_call.1} parent=1 // pred_check_branch
      %9 = sbr.rel (0) target = $region5
    $region4: #{tpu_custom_call.1} parent=1 // pred_region
      %s11 = ssub.s32 5760, 5760
      %12 = vsyncadd [#allocation3], %s11
      %s13 = sshll.u32 [#allocation2], 4
      %s14 = int_to_ptr.vmem [resolvable:$true] %s13
      %19 = dma.hbm_to_vmem [thread:$0]  %s0, 5760, %s14, [#allocation3], 128, 128, 8
    $region5: #{tpu_custom_call.1} parent=1 // pred_fallthru
      _
    // Predicated region
    $region6: #{tpu_custom_call.1} parent=1 // pred_check
      _
    $region7: #{tpu_custom_call.1} parent=1 // pred_check_branch
      %21 = sbr.rel (0) target = $region9
    $region8: #{tpu_custom_call.1} parent=1 // pred_region
      %22 = dma.done [#allocation3], 5760
    $region9: #{tpu_custom_call.1} parent=1 // pred_fallthru
      _
    %v23 = vld [vmem:[#allocation2] sm:$0xff]
    %v24 = vld [vmem:[#allocation2 + $0x8] sm:$0xff]
    %v25 = vld [vmem:[#allocation2 + $0x10] sm:$0xff]
    %v26 = vld [vmem:[#allocation2 + $0x18] sm:$0xff]
    %v27 = vld [vmem:[#allocation2 + $0x20] sm:$0xff]
    %s28 = scalar_lea.vmem [#allocation2], 40
    %v29 = vld [vmem:[%s28] sm:$0xff]
    %v30 = vld [vmem:[%s28 + $0x8] sm:$0xff]
    %v31 = vld [vmem:[%s28 + $0x10] sm:$0xff]
    %v32 = vld [vmem:[%s28 + $0x18] sm:$0xff]
    %v33 = vld [vmem:[%s28 + $0x20] sm:$0xff]
    %v34 = vmax.f32 %v23, %v29
    %v35 = vmax.f32 %v24, %v30
    %v36 = vmax.f32 %v25, %v31
    %v37 = vmax.f32 %v26, %v32
    %v38 = vmax.f32 %v27, %v33
    %s39 = scalar_lea.vmem [#allocation2], 80
    %v40 = vld [vmem:[%s39] sm:$0xff]
    %v41 = vld [vmem:[%s39 + $0x8] sm:$0xff]
    %v42 = vld [vmem:[%s39 + $0x10] sm:$0xff]
    %v43 = vld [vmem:[%s39 + $0x18] sm:$0xff]
    %v44 = vld [vmem:[%s39 + $0x20] sm:$0xff]
    %v45 = vmax.f32 %v34, %v40
    %v46 = vmax.f32 %v35, %v41
    %v47 = vmax.f32 %v36, %v42
    %v48 = vmax.f32 %v37, %v43
    %v49 = vmax.f32 %v38, %v44
    %s50 = scalar_lea.vmem [#allocation2], 120
    %v51 = vld [vmem:[%s50] sm:$0xff]
    %v52 = vld [vmem:[%s50 + $0x8] sm:$0xff]
    %v53 = vld [vmem:[%s50 + $0x10] sm:$0xff]
    %v54 = vld [vmem:[%s50 + $0x18] sm:$0xff]
    %v55 = vld [vmem:[%s50 + $0x20] sm:$0xff]
    %v56 = vmax.f32 %v45, %v51
    %v57 = vmax.f32 %v46, %v52
    %v58 = vmax.f32 %v47, %v53
    %v59 = vmax.f32 %v48, %v54
    %v60 = vmax.f32 %v49, %v55
    %s61 = scalar_lea.vmem [#allocation2], 160
    %v62 = vld [vmem:[%s61] sm:$0xff]
    %v63 = vld [vmem:[%s61 + $0x8] sm:$0xff]
    %v64 = vld [vmem:[%s61 + $0x10] sm:$0xff]
    %v65 = vld [vmem:[%s61 + $0x18] sm:$0xff]
    %v66 = vld [vmem:[%s61 + $0x20] sm:$0xff]
    %v67 = vmax.f32 %v56, %v62
    %v68 = vmax.f32 %v57, %v63
    %v69 = vmax.f32 %v58, %v64
    %v70 = vmax.f32 %v59, %v65
    %v71 = vmax.f32 %v60, %v66
    %s72 = scalar_lea.vmem [#allocation2], 200
    %v73 = vld [vmem:[%s72] sm:$0xff]
    %v74 = vld [vmem:[%s72 + $0x8] sm:$0xff]
    %v75 = vld [vmem:[%s72 + $0x10] sm:$0xff]
    %v76 = vld [vmem:[%s72 + $0x18] sm:$0xff]
    %v77 = vld [vmem:[%s72 + $0x20] sm:$0xff]
    %v78 = vmax.f32 %v67, %v73
    %v79 = vmax.f32 %v68, %v74
    %v80 = vmax.f32 %v69, %v75
    %v81 = vmax.f32 %v70, %v76
    %v82 = vmax.f32 %v71, %v77
    %s83 = scalar_lea.vmem [#allocation2], 240
    %v84 = vld [vmem:[%s83] sm:$0xff]
    %v85 = vld [vmem:[%s83 + $0x8] sm:$0xff]
    %v86 = vld [vmem:[%s83 + $0x10] sm:$0xff]
    %v87 = vld [vmem:[%s83 + $0x18] sm:$0xff]
    %v88 = vld [vmem:[%s83 + $0x20] sm:$0xff]
    %v89 = vmax.f32 %v78, %v84
    %v90 = vmax.f32 %v79, %v85
    %v91 = vmax.f32 %v80, %v86
    %v92 = vmax.f32 %v81, %v87
    %v93 = vmax.f32 %v82, %v88
    %s94 = scalar_lea.vmem [#allocation2], 280
    %v95 = vld [vmem:[%s94] sm:$0xff]
    %v96 = vld [vmem:[%s94 + $0x8] sm:$0xff]
    %v97 = vld [vmem:[%s94 + $0x10] sm:$0xff]
    %v98 = vld [vmem:[%s94 + $0x18] sm:$0xff]
    %v99 = vld [vmem:[%s94 + $0x20] sm:$0xff]
    %v100 = vmax.f32 %v89, %v95
    %v101 = vmax.f32 %v90, %v96
    %v102 = vmax.f32 %v91, %v97
    %v103 = vmax.f32 %v92, %v98
    %v104 = vmax.f32 %v93, %v99
    %s105 = scalar_lea.vmem [#allocation2], 320
    %v106 = vld [vmem:[%s105] sm:$0xff]
    %v107 = vld [vmem:[%s105 + $0x8] sm:$0xff]
    %v108 = vld [vmem:[%s105 + $0x10] sm:$0xff]
    %v109 = vld [vmem:[%s105 + $0x18] sm:$0xff]
    %v110 = vld [vmem:[%s105 + $0x20] sm:$0xff]
    %v111 = vmax.f32 %v100, %v106
    %v112 = vmax.f32 %v101, %v107
    %v113 = vmax.f32 %v102, %v108
    %v114 = vmax.f32 %v103, %v109
    %v115 = vmax.f32 %v104, %v110
    %116 = vst [vmem:[#allocation5] sm:$0xff] %v111
    %117 = vst [vmem:[#allocation5 + $0x8] sm:$0xff] %v112
    %118 = vst [vmem:[#allocation5 + $0x10] sm:$0xff] %v113
    %119 = vst [vmem:[#allocation5 + $0x18] sm:$0xff] %v114
    %120 = vst [vmem:[#allocation5 + $0x20] sm:$0xff] %v115
    // Predicated region
    $region10: #{tpu_custom_call.1} parent=1 // pred_check
      _
    $region11: #{tpu_custom_call.1} parent=1 // pred_check_branch
      %122 = sbr.rel (0) target = $region13
    $region12: #{tpu_custom_call.1} parent=1 // pred_region
      %s124 = ssub.s32 640, 640
      %125 = vsyncadd [#allocation4], %s124
      %s126 = sshll.u32 [#allocation5], 4
      %s127 = int_to_ptr.vmem [resolvable:$true] %s126
      %132 = dma.vmem_to_hbm [thread:$0]  %s127, 640, %s1, [#allocation4], 128, 128, 8
    $region13: #{tpu_custom_call.1} parent=1 // pred_fallthru
      _
    // Predicated region
    $region14: #{tpu_custom_call.1} parent=1 // pred_check
      _
    $region15: #{tpu_custom_call.1} parent=1 // pred_check_branch
      %134 = sbr.rel (0) target = $region17
    $region16: #{tpu_custom_call.1} parent=1 // pred_region
      %135 = dma.done [#allocation4], 640
    $region17: #{tpu_custom_call.1} parent=1 // pred_fallthru
      _
    %136 = vsyncpa [#allocation3], 1
    %137 = vsyncpa [#allocation4], 1

</llo_original>
